<compile_context>
chip_gen: v7x
topology: tpu7x:2x2x1
jax: 0.10.0
libtpu: 0.0.40
codegen_flags: <defaults>
</compile_context>

<pallas_src>
import functools

import jax
import jax.numpy as jnp
from jax import lax
from jax.experimental import pallas as pl
from jax.experimental.pallas import tpu as pltpu


# ----------------------------------------------------------------------------
# Fused Pallas kernel: pool + projections + attention + upsample + residual
# ----------------------------------------------------------------------------
def _bam_fused_kernel(x_ref, src_ref, w_ref, b_ref, out_ref, *, ck, ds):
    """Fused BAM for one batch block.

    x_ref  : (Bb, C, HW)    original features, flattened spatial (lane-dense)
    src_ref: (1, HW) int32  src[hw] = pooled-pixel index covering output pixel hw
    w_ref  : (2*Ck+C, C)    packed [wq * scale ; wk ; wv]
    b_ref  : (2*Ck+C, 1)    packed [bq * scale ; bk ; bv]
    out_ref: (Bb, C, HW)
    """
    Bb, C, HW = x_ref.shape
    N = HW // (ds * ds)
    inv_pool = 1.0 / float(ds * ds)

    # Pool/upsample indicator built in-kernel (never touches HBM):
    # up[n, hw] = 1 iff pooled pixel n covers full-res pixel hw.
    n_ids = lax.broadcasted_iota(jnp.int32, (N, HW), 0)
    up = (n_ids == src_ref[...]).astype(jnp.float32)                        # (N, HW)

    w = w_ref[...]
    b = b_ref[...]

    # Static unroll over the batch block: at Bb<=2 this gives the VLIW
    # scheduler independent MXU chains to interleave.
    for bi in range(Bb):
        xb = x_ref[bi]                                                       # (C, HW)

        # AvgPool2d(ds) as an indicator matmul on the MXU: xp = x @ up^T / ds^2
        xp = lax.dot_general(xb, up, (((1,), (1,)), ((), ())),
                             preferred_element_type=jnp.float32) * inv_pool  # (C, N)

        # All three 1x1-conv projections in a single matmul
        # (softmax scale pre-folded into the q rows / bias).
        qkv = jnp.dot(w, xp, preferred_element_type=jnp.float32) + b         # (2Ck+C, N)
        q = qkv[:ck]                                                         # (Ck, N)
        k = qkv[ck:2 * ck]                                                   # (Ck, N)
        v = qkv[2 * ck:]                                                     # (C,  N)

        # energy[n, m] = sum_c q[c, n] * k[c, m]   (== bmm(q^T, k), scale folded)
        energy = lax.dot_general(q, k, (((0,), (0,)), ((), ())),
                                 preferred_element_type=jnp.float32)         # (N, N)

        # Softmax over keys; reciprocal goes to the otherwise-idle EUP.
        m = jnp.max(energy, axis=-1, keepdims=True)
        e = jnp.exp(energy - m)
        attn = e * pl.reciprocal(jnp.sum(e, axis=-1, keepdims=True), approx=True)

        # out_small[c, n] = sum_m v[c, m] * attn[n, m]   (== bmm(v, attn^T))
        out_small = lax.dot_general(v, attn, (((1,), (1,)), ((), ())),
                                    preferred_element_type=jnp.float32)      # (C, N)

        # Nearest-neighbor upsample as an indicator matmul, fused with the
        # residual add -> single unmasked lane-dense (C, HW) store.
        out_ref[bi] = (jnp.dot(out_small, up, preferred_element_type=jnp.float32)
                       + xb).astype(out_ref.dtype)


# ----------------------------------------------------------------------------
# Wrapper
# ----------------------------------------------------------------------------
def bam_forward(x, params, ds=4, split_batch_grid=False):
    """Full BAM forward. x: (B, C, H, W) NCHW float32.

    split_batch_grid=False (default): one grid step covering the whole batch.
      Best on single-TensorCore chips (v5e/v6e) where the grid is a serial loop.
    split_batch_grid=True: grid=(B,) marked "parallel" so a multi-TC chip
      (v7x) splits the batch across its two TensorCores.
    """
    B, C, H, W = x.shape
    HW = H * W
    hp, wp = H // ds, W // ds
    N = hp * wp
    Ck = C // 8
    KO = 2 * Ck + C
    scale = float(Ck) ** (-0.5)

    x_flat = x.reshape(B, C, HW)

    # Pack [q; k; v] weights/biases; fold the softmax scale into q (trace-time).
    w_all = jnp.concatenate([params["wq"] * scale, params["wk"], params["wv"]],
                            axis=0)                                           # (KO, C)
    b_all = jnp.concatenate([params["bq"] * scale, params["bk"], params["bv"]],
                            axis=0)                                           # (KO, 1)

    # Tiny (1, HW) int32 map: src[hw] = pooled pixel index covering hw.
    ys = jnp.arange(H) // ds
    xs = jnp.arange(W) // ds
    src = (ys[:, None] * wp + xs[None, :]).reshape(1, HW).astype(jnp.int32)

    kernel = functools.partial(_bam_fused_kernel, ck=Ck, ds=ds)

    # Advisory cost: this call is cheap and memory-bound (2 passes over x).
    flops_per_b = (2 * C * HW * N        # pooling indicator matmul
                   + 2 * KO * C * N      # packed projection
                   + 2 * Ck * N * N      # energy
                   + 2 * C * N * N       # attn @ v
                   + 2 * C * N * HW)     # upsample indicator matmul
    cost = pl.CostEstimate(
        flops=B * flops_per_b,
        transcendentals=B * N * N,
        bytes_accessed=2 * B * C * HW * 4 + KO * (C + 1) * 4 + HW * 4,
    )

    if split_batch_grid:
        bb, grid = 1, (B,)
    else:
        bb, grid = B, (1,)

    out = pl.pallas_call(
        kernel,
        out_shape=jax.ShapeDtypeStruct((B, C, HW), jnp.float32),
        grid=grid,
        in_specs=[
            pl.BlockSpec((bb, C, HW), lambda i: (i, 0, 0)),
            pl.BlockSpec((1, HW), lambda i: (0, 0)),
            pl.BlockSpec((KO, C), lambda i: (0, 0)),
            pl.BlockSpec((KO, 1), lambda i: (0, 0)),
        ],
        out_specs=pl.BlockSpec((bb, C, HW), lambda i: (i, 0, 0)),
        compiler_params=pltpu.CompilerParams(dimension_semantics=("parallel",)),
        cost_estimate=cost,
    )(x_flat, src, w_all, b_all)
    return out.reshape(B, C, H, W)


# ----------------------------------------------------------------------------
# Pure-JAX reference (exact softmax / repeat) for correctness check
# ----------------------------------------------------------------------------
def bam_reference(x, params, ds=4):
    B, C, H, W = x.shape
    hp, wp = H // ds, W // ds
    N = hp * wp
    xp = x.reshape(B, C, hp, ds, wp, ds).mean(axis=(3, 5)).reshape(B, C, N)
    q = jnp.einsum("oc,bcn->bon", params["wq"], xp) + params["bq"][None]
    k = jnp.einsum("oc,bcn->bon", params["wk"], xp) + params["bk"][None]
    v = jnp.einsum("oc,bcn->bon", params["wv"], xp) + params["bv"][None]
    energy = jnp.einsum("bcn,bcm->bnm", q, k) * (C // 8) ** (-0.5)
    attn = jax.nn.softmax(energy, axis=-1)
    out = jnp.einsum("bcm,bnm->bcn", v, attn).reshape(B, C, hp, wp)
    out = jnp.repeat(jnp.repeat(out, ds, axis=2), ds, axis=3)
    return out + x


# ----------------------------------------------------------------------------
# Main
# ----------------------------------------------------------------------------
if __name__ == "__main__":
    key = jax.random.PRNGKey(0)
    B, C, H, W = 2, 32, 16, 16   # in_dim=32 (divisible by 8), ds=4
    ds = 4
    Ck = C // 8

    k_x, k_wq, k_bq, k_wk, k_bk, k_wv, k_bv = jax.random.split(key, 7)
    x = jax.random.normal(k_x, (B, C, H, W), dtype=jnp.float32)

    # Deterministic synthetic parameters (shapes from the module's __init__).
    params = {
        "wq": jax.random.normal(k_wq, (Ck, C), dtype=jnp.float32) * 0.1,
        "bq": jax.random.normal(k_bq, (Ck, 1), dtype=jnp.float32) * 0.1,
        "wk": jax.random.normal(k_wk, (Ck, C), dtype=jnp.float32) * 0.1,
        "bk": jax.random.normal(k_bk, (Ck, 1), dtype=jnp.float32) * 0.1,
        "wv": jax.random.normal(k_wv, (C, C), dtype=jnp.float32) * 0.1,
        "bv": jax.random.normal(k_bv, (C, 1), dtype=jnp.float32) * 0.1,
        # self.gamma exists in __init__ but is never used in forward().
    }

    ref = jax.block_until_ready(bam_reference(x, params, ds=ds))

    # Validate both grid layouts: collapsed (v5e/v6e default) and batch-split (v7x).
    for split in (False, True):
        out = jax.block_until_ready(bam_forward(x, params, ds=ds,
                                                split_batch_grid=split))
        assert out.shape == (B, C, H, W)
        # Slightly relaxed tolerance: approx reciprocal (EUP) in the softmax denom.
        max_err = float(jnp.max(jnp.abs(out - ref)))
        assert max_err < 1e-2, (
            f"mismatch vs reference (split_batch_grid={split}), "
            f"max abs err = {max_err}")

    print("KERNEL_OK")
</pallas_src>

<mosaic_0001>
module attributes {stable_mosaic.version = 11 : i64} {
  func.func @_bam_fused_kernel(%arg0: i32, %arg1: memref<2x32x256xf32, #tpu.memory_space<vmem>>, %arg2: memref<1x256xi32, #tpu.memory_space<vmem>>, %arg3: memref<40x32xf32, #tpu.memory_space<vmem>>, %arg4: memref<40x1xf32, #tpu.memory_space<vmem>>, %arg5: memref<2x32x256xf32, #tpu.memory_space<vmem>>) attributes {dimension_semantics = [#tpu.dimension_semantics<parallel>], iteration_bounds = array<i64: 1>, scalar_prefetch = 0 : i64, scratch_operands = 0 : i64, tpu.core_type = #tpu.core_type<tc>, window_params = [{transform_indices = @transform_0, window_bounds = array<i64: 2, 32, 256>}, {pipeline_mode = #tpu.pipeline_mode<synchronous>, transform_indices = @transform_1, window_bounds = array<i64: 1, 256>}, {pipeline_mode = #tpu.pipeline_mode<synchronous>, transform_indices = @transform_2, window_bounds = array<i64: 40, 32>}, {pipeline_mode = #tpu.pipeline_mode<synchronous>, transform_indices = @transform_3, window_bounds = array<i64: 40, 1>}, {transform_indices = @transform_4, window_bounds = array<i64: 2, 32, 256>}]} {
    %0 = tpu.iota {dimensions = array<i32: 0>} : vector<16x256xi32>
    %c0 = arith.constant 0 : index
    %c0_0 = arith.constant 0 : index
    %1 = vector.load %arg2[%c0, %c0_0] : memref<1x256xi32, #tpu.memory_space<vmem>>, vector<1x256xi32>
    %2 = vector.broadcast %1 : vector<1x256xi32> to vector<16x256xi32>
    %3 = arith.cmpi eq, %0, %2 : vector<16x256xi32>
    %4 = arith.extui %3 : vector<16x256xi1> to vector<16x256xi32>
    %5 = arith.sitofp %4 : vector<16x256xi32> to vector<16x256xf32>
    %c0_1 = arith.constant 0 : index
    %c0_2 = arith.constant 0 : index
    %6 = vector.load %arg3[%c0_1, %c0_2] : memref<40x32xf32, #tpu.memory_space<vmem>>, vector<40x32xf32>
    %c0_3 = arith.constant 0 : index
    %c0_4 = arith.constant 0 : index
    %7 = vector.load %arg4[%c0_3, %c0_4] : memref<40x1xf32, #tpu.memory_space<vmem>>, vector<40x1xf32>
    %c0_5 = arith.constant 0 : index
    %c0_6 = arith.constant 0 : index
    %c0_7 = arith.constant 0 : index
    %8 = vector.load %arg1[%c0_5, %c0_6, %c0_7] : memref<2x32x256xf32, #tpu.memory_space<vmem>>, vector<1x32x256xf32>
    %9 = vector.shape_cast %8 : vector<1x32x256xf32> to vector<32x256xf32>
    %cst = arith.constant dense<0.000000e+00> : vector<32x16xf32>
    %10 = tpu.matmul %9, %5, %cst {dimension_numbers = #tpu.dot_dimension_numbers<[1], [1], [0], [0], [0, 0, 1, 0], [], []>} : vector<32x256xf32>, vector<16x256xf32>, vector<32x16xf32> -> vector<32x16xf32>
    %cst_8 = arith.constant 6.250000e-02 : f32
    %11 = vector.broadcast %cst_8 : f32 to vector<32x16xf32>
    %12 = arith.mulf %10, %11 : vector<32x16xf32>
    %cst_9 = arith.constant dense<0.000000e+00> : vector<40x16xf32>
    %13 = tpu.matmul %6, %12, %cst_9 {dimension_numbers = #tpu.dot_dimension_numbers<[1], [0], [0], [1], [0, 0, 1, 1], [], []>} : vector<40x32xf32>, vector<32x16xf32>, vector<40x16xf32> -> vector<40x16xf32>
    %14 = vector.broadcast %7 : vector<40x1xf32> to vector<40x16xf32>
    %15 = arith.addf %13, %14 : vector<40x16xf32>
    %16 = vector.extract_strided_slice %15 {offsets = [0, 0], sizes = [4, 16], strides = [1, 1]} : vector<40x16xf32> to vector<4x16xf32>
    %17 = vector.extract_strided_slice %15 {offsets = [4, 0], sizes = [4, 16], strides = [1, 1]} : vector<40x16xf32> to vector<4x16xf32>
    %18 = vector.extract_strided_slice %15 {offsets = [8, 0], sizes = [32, 16], strides = [1, 1]} : vector<40x16xf32> to vector<32x16xf32>
    %cst_10 = arith.constant dense<0.000000e+00> : vector<16x16xf32>
    %19 = tpu.matmul %16, %17, %cst_10 {dimension_numbers = #tpu.dot_dimension_numbers<[0], [0], [1], [1], [0, 1, 1, 1], [], []>} : vector<4x16xf32>, vector<4x16xf32>, vector<16x16xf32> -> vector<16x16xf32>
    %cst_11 = arith.constant dense<0xFF800000> : vector<16xf32>
    %20 = vector.multi_reduction <maximumf>, %19, %cst_11 [1] : vector<16x16xf32> to vector<16xf32>
    %21 = vector.shape_cast %20 : vector<16xf32> to vector<16x1xf32>
    %22 = vector.broadcast %21 : vector<16x1xf32> to vector<16x16xf32>
    %23 = arith.subf %19, %22 : vector<16x16xf32>
    %24 = math.exp %23 : vector<16x16xf32>
    %cst_12 = arith.constant dense<0.000000e+00> : vector<16xf32>
    %25 = vector.multi_reduction <add>, %24, %cst_12 [1] : vector<16x16xf32> to vector<16xf32>
    %26 = vector.shape_cast %25 : vector<16xf32> to vector<16x1xf32>
    %27 = tpu.reciprocal %26 {approx = true} : vector<16x1xf32> -> vector<16x1xf32>
    %28 = vector.broadcast %27 : vector<16x1xf32> to vector<16x16xf32>
    %29 = arith.mulf %24, %28 : vector<16x16xf32>
    %cst_13 = arith.constant dense<0.000000e+00> : vector<32x16xf32>
    %30 = tpu.matmul %18, %29, %cst_13 {dimension_numbers = #tpu.dot_dimension_numbers<[1], [1], [0], [0], [0, 0, 1, 0], [], []>} : vector<32x16xf32>, vector<16x16xf32>, vector<32x16xf32> -> vector<32x16xf32>
    %cst_14 = arith.constant dense<0.000000e+00> : vector<32x256xf32>
    %31 = tpu.matmul %30, %5, %cst_14 {dimension_numbers = #tpu.dot_dimension_numbers<[1], [0], [0], [1], [0, 0, 1, 1], [], []>} : vector<32x16xf32>, vector<16x256xf32>, vector<32x256xf32> -> vector<32x256xf32>
    %32 = arith.addf %31, %9 : vector<32x256xf32>
    %c0_15 = arith.constant 0 : index
    %c0_16 = arith.constant 0 : index
    %c0_17 = arith.constant 0 : index
    %33 = vector.load %arg5[%c0_15, %c0_16, %c0_17] : memref<2x32x256xf32, #tpu.memory_space<vmem>>, vector<1x32x256xf32>
    %34 = vector.shape_cast %33 : vector<1x32x256xf32> to vector<32x256xf32>
    %35 = vector.shape_cast %32 : vector<32x256xf32> to vector<1x32x256xf32>
    tpu.vector_store %arg5[%c0_15, %c0_16, %c0_17], %35 {strides = array<i32>} : memref<2x32x256xf32, #tpu.memory_space<vmem>>, vector<1x32x256xf32>,
    %c1 = arith.constant 1 : index
    %c0_18 = arith.constant 0 : index
    %c0_19 = arith.constant 0 : index
    %36 = vector.load %arg1[%c1, %c0_18, %c0_19] : memref<2x32x256xf32, #tpu.memory_space<vmem>>, vector<1x32x256xf32>
    %37 = vector.shape_cast %36 : vector<1x32x256xf32> to vector<32x256xf32>
    %cst_20 = arith.constant dense<0.000000e+00> : vector<32x16xf32>
    %38 = tpu.matmul %37, %5, %cst_20 {dimension_numbers = #tpu.dot_dimension_numbers<[1], [1], [0], [0], [0, 0, 1, 0], [], []>} : vector<32x256xf32>, vector<16x256xf32>, vector<32x16xf32> -> vector<32x16xf32>
    %cst_21 = arith.constant 6.250000e-02 : f32
    %39 = vector.broadcast %cst_21 : f32 to vector<32x16xf32>
    %40 = arith.mulf %38, %39 : vector<32x16xf32>
    %cst_22 = arith.constant dense<0.000000e+00> : vector<40x16xf32>
    %41 = tpu.matmul %6, %40, %cst_22 {dimension_numbers = #tpu.dot_dimension_numbers<[1], [0], [0], [1], [0, 0, 1, 1], [], []>} : vector<40x32xf32>, vector<32x16xf32>, vector<40x16xf32> -> vector<40x16xf32>
    %42 = vector.broadcast %7 : vector<40x1xf32> to vector<40x16xf32>
    %43 = arith.addf %41, %42 : vector<40x16xf32>
    %44 = vector.extract_strided_slice %43 {offsets = [0, 0], sizes = [4, 16], strides = [1, 1]} : vector<40x16xf32> to vector<4x16xf32>
    %45 = vector.extract_strided_slice %43 {offsets = [4, 0], sizes = [4, 16], strides = [1, 1]} : vector<40x16xf32> to vector<4x16xf32>
    %46 = vector.extract_strided_slice %43 {offsets = [8, 0], sizes = [32, 16], strides = [1, 1]} : vector<40x16xf32> to vector<32x16xf32>
    %cst_23 = arith.constant dense<0.000000e+00> : vector<16x16xf32>
    %47 = tpu.matmul %44, %45, %cst_23 {dimension_numbers = #tpu.dot_dimension_numbers<[0], [0], [1], [1], [0, 1, 1, 1], [], []>} : vector<4x16xf32>, vector<4x16xf32>, vector<16x16xf32> -> vector<16x16xf32>
    %cst_24 = arith.constant dense<0xFF800000> : vector<16xf32>
    %48 = vector.multi_reduction <maximumf>, %47, %cst_24 [1] : vector<16x16xf32> to vector<16xf32>
    %49 = vector.shape_cast %48 : vector<16xf32> to vector<16x1xf32>
    %50 = vector.broadcast %49 : vector<16x1xf32> to vector<16x16xf32>
    %51 = arith.subf %47, %50 : vector<16x16xf32>
    %52 = math.exp %51 : vector<16x16xf32>
    %cst_25 = arith.constant dense<0.000000e+00> : vector<16xf32>
    %53 = vector.multi_reduction <add>, %52, %cst_25 [1] : vector<16x16xf32> to vector<16xf32>
    %54 = vector.shape_cast %53 : vector<16xf32> to vector<16x1xf32>
    %55 = tpu.reciprocal %54 {approx = true} : vector<16x1xf32> -> vector<16x1xf32>
    %56 = vector.broadcast %55 : vector<16x1xf32> to vector<16x16xf32>
    %57 = arith.mulf %52, %56 : vector<16x16xf32>
    %cst_26 = arith.constant dense<0.000000e+00> : vector<32x16xf32>
    %58 = tpu.matmul %46, %57, %cst_26 {dimension_numbers = #tpu.dot_dimension_numbers<[1], [1], [0], [0], [0, 0, 1, 0], [], []>} : vector<32x16xf32>, vector<16x16xf32>, vector<32x16xf32> -> vector<32x16xf32>
    %cst_27 = arith.constant dense<0.000000e+00> : vector<32x256xf32>
    %59 = tpu.matmul %58, %5, %cst_27 {dimension_numbers = #tpu.dot_dimension_numbers<[1], [0], [0], [1], [0, 0, 1, 1], [], []>} : vector<32x16xf32>, vector<16x256xf32>, vector<32x256xf32> -> vector<32x256xf32>
    %60 = arith.addf %59, %37 : vector<32x256xf32>
    %c1_28 = arith.constant 1 : index
    %c0_29 = arith.constant 0 : index
    %c0_30 = arith.constant 0 : index
    %61 = vector.load %arg5[%c1_28, %c0_29, %c0_30] : memref<2x32x256xf32, #tpu.memory_space<vmem>>, vector<1x32x256xf32>
    %62 = vector.shape_cast %61 : vector<1x32x256xf32> to vector<32x256xf32>
    %63 = vector.shape_cast %60 : vector<32x256xf32> to vector<1x32x256xf32>
    tpu.vector_store %arg5[%c1_28, %c0_29, %c0_30], %63 {strides = array<i32>} : memref<2x32x256xf32, #tpu.memory_space<vmem>>, vector<1x32x256xf32>,
    return
  }
  func.func @transform_0(%arg0: i32) -> (i32, i32, i32) {
    %c0_i32 = arith.constant 0 : i32
    %c0_i32_0 = arith.constant 0 : i32
    %c0_i32_1 = arith.constant 0 : i32
    return %arg0, %c0_i32, %c0_i32_0 : i32, i32, i32
  }
  func.func @transform_1(%arg0: i32) -> (i32, i32) {
    %c0_i32 = arith.constant 0 : i32
    %c0_i32_0 = arith.constant 0 : i32
    %c0_i32_1 = arith.constant 0 : i32
    return %c0_i32, %c0_i32_0 : i32, i32
  }
  func.func @transform_2(%arg0: i32) -> (i32, i32) {
    %c0_i32 = arith.constant 0 : i32
    %c0_i32_0 = arith.constant 0 : i32
    %c0_i32_1 = arith.constant 0 : i32
    return %c0_i32, %c0_i32_0 : i32, i32
  }
  func.func @transform_3(%arg0: i32) -> (i32, i32) {
    %c0_i32 = arith.constant 0 : i32
    %c0_i32_0 = arith.constant 0 : i32
    %c0_i32_1 = arith.constant 0 : i32
    return %c0_i32, %c0_i32_0 : i32, i32
  }
  func.func @transform_4(%arg0: i32) -> (i32, i32, i32) {
    %c0_i32 = arith.constant 0 : i32
    %c0_i32_0 = arith.constant 0 : i32
    %c0_i32_1 = arith.constant 0 : i32
    return %arg0, %c0_i32, %c0_i32_0 : i32, i32, i32
  }
}

</mosaic_0001>

<llo_original>
// kernel: tpu_custom_call.1
$region0: #{tpu_custom_call.1}
  #allocation0 [shape = 'u32[]', space=smem, size = 0x4, offset = 0x4, fixed_abs, tag = 'smem constant byte address 0x4 - core index']
  #allocation1 [shape = 'u32[144,128]{1,0:T(1,128)}', space=vmem, size = 0x12000, scoped, tag = 'internal scratch']
  %s0 = inlined_call_operand.hbm [shape: f32[2,32,256], index: 0, kind: input, shape index: {}]
  %s1 = inlined_call_operand.vmem [shape: s32[1,256], index: 1, kind: input, shape index: {}]
  %s2 = inlined_call_operand.vmem [shape: f32[40,32], index: 2, kind: input, shape index: {}]
  %s3 = inlined_call_operand.vmem [shape: f32[40,1], index: 3, kind: input, shape index: {}]
  %s4 = inlined_call_operand.hbm [shape: f32[2,32,256], index: 4, kind: output, shape index: {}]
  %s5 = sld [smem:[#allocation0]]
  $region30: #{tpu_custom_call.1} parent=0
    _
  %s7 = ssub.s32 1, %s5
  %s8 = scalar_select 0, %s7, %s5
  $region1: #{tpu_custom_call.1} parent=0
    #allocation2 [shape = 'u8[65536]{0}', space=vmem, size = 0x10000, scoped, tag = 'input window, operand 0, single buffered']
    #allocation3 [shape = 's32[1]{0}', space=sflag, size = 0x4, scoped, tag = 'scoped memory for tpu_custom_call.1']
    #allocation4 [shape = 's32[1]{0}', space=sflag, size = 0x4, scoped, tag = 'scoped memory for tpu_custom_call.1']
    #allocation5 [shape = 'u8[65536]{0}', space=vmem, size = 0x10000, scoped, tag = 'output window, operand 0, single buffered']
    %9 = vsyncpa [#allocation3], 0
    %10 = vsyncpa [#allocation4], 0
    // Predicated region
    $region2: #{tpu_custom_call.1} parent=1 // pred_check
      _
    $region3: #{tpu_custom_call.1} parent=1 // pred_check_branch
      %12 = sbr.rel (0) target = $region5
    $region4: #{tpu_custom_call.1} parent=1 // pred_region
      %s14 = ssub.s32 2048, 2048
      %15 = vsyncadd [#allocation3], %s14
      %s16 = sshll.u32 [#allocation2], 4
      %s17 = int_to_ptr.vmem [resolvable:$true] %s16
      %22 = dma.hbm_to_vmem [thread:$0]  %s0, 2048, %s17, [#allocation3], 256, 256, 16
    $region5: #{tpu_custom_call.1} parent=1 // pred_fallthru
      _
    // Predicated region
    $region6: #{tpu_custom_call.1} parent=1 // pred_check
      _
    $region7: #{tpu_custom_call.1} parent=1 // pred_check_branch
      %24 = sbr.rel (0) target = $region9
    $region8: #{tpu_custom_call.1} parent=1 // pred_region
      _
    $region9: #{tpu_custom_call.1} parent=1 // pred_fallthru
      _
    // Predicated region
    $region10: #{tpu_custom_call.1} parent=1 // pred_check
      _
    $region11: #{tpu_custom_call.1} parent=1 // pred_check_branch
      %26 = sbr.rel (0) target = $region13
    $region12: #{tpu_custom_call.1} parent=1 // pred_region
      _
    $region13: #{tpu_custom_call.1} parent=1 // pred_fallthru
      _
    // Predicated region
    $region14: #{tpu_custom_call.1} parent=1 // pred_check
      _
    $region15: #{tpu_custom_call.1} parent=1 // pred_check_branch
      %28 = sbr.rel (0) target = $region17
    $region16: #{tpu_custom_call.1} parent=1 // pred_region
      _
    $region17: #{tpu_custom_call.1} parent=1 // pred_fallthru
      _
    // Predicated region
    $region18: #{tpu_custom_call.1} parent=1 // pred_check
      _
    $region19: #{tpu_custom_call.1} parent=1 // pred_check_branch
      %30 = sbr.rel (0) target = $region21
    $region20: #{tpu_custom_call.1} parent=1 // pred_region
      %31 = dma.done [#allocation3], 2048
    $region21: #{tpu_custom_call.1} parent=1 // pred_fallthru
      _
    %v32 = vlaneseq
    %v33 = vshrl.u32 %v32, 7
    %v34 = vadd.s32 %v33, 8
    %v35 = vld [vmem:[%s1] sm:$0x3]
    %v36 = vlaneseq
    %v37 = vshrl.u32 %v36, 7
    %v38 = vsub.s32 0, %v37
    %v39 = vrot.slane %v35, %v38
    %v40 = vlaneseq
    %v41 = vshrl.u32 %v40, 7
    %v42 = vsub.s32 1, %v41
    %v43 = vrot.slane %v35, %v42
    %vm44 = vcmp.eq.s32.totalorder %v33, %v39
    %vm45 = vcmp.eq.s32.totalorder %v33, %v43
    %vm46 = vcmp.eq.s32.totalorder %v34, %v39
    %vm47 = vcmp.eq.s32.totalorder %v34, %v43
    %v48 = vsel %vm44, 1, 0
    %v49 = vsel %vm45, 1, 0
    %v50 = vsel %vm46, 1, 0
    %v51 = vsel %vm47, 1, 0
    %v52 = vcvt.s32.f32 %v48
    %v53 = vcvt.s32.f32 %v49
    %v54 = vcvt.s32.f32 %v50
    %v55 = vcvt.s32.f32 %v51
    %v56 = vld [vmem:[%s2] sm:$0xff]
    %v57 = vld [vmem:[%s2 + $0x8] sm:$0xff]
    %v58 = vld [vmem:[%s2 + $0x10] sm:$0xff]
    %v59 = vld [vmem:[%s2 + $0x18] sm:$0xff]
    %v60 = vld [vmem:[%s2 + $0x20] sm:$0xff]
    %v61 = vld [vmem:[%s3] sm:$0xff]
    %v62 = vld [vmem:[%s3 + $0x8] sm:$0xff]
    %v63 = vld [vmem:[%s3 + $0x10] sm:$0xff]
    %v64 = vld [vmem:[%s3 + $0x18] sm:$0xff]
    %v65 = vld [vmem:[%s3 + $0x20] sm:$0xff]
    %v66 = vld [vmem:[#allocation2] sm:$0xff]
    %v67 = vld [vmem:[#allocation2 + $0x8] sm:$0xff]
    %v68 = vld [vmem:[#allocation2 + $0x10] sm:$0xff]
    %v69 = vld [vmem:[#allocation2 + $0x18] sm:$0xff]
    %v70 = vld [vmem:[#allocation2 + $0x20] sm:$0xff]
    %v71 = vld [vmem:[#allocation2 + $0x28] sm:$0xff]
    %v72 = vld [vmem:[#allocation2 + $0x30] sm:$0xff]
    %v73 = vld [vmem:[#allocation2 + $0x38] sm:$0xff]
    %74 = vmatprep.subr.mxu0 %v53
    %75 = vmatpush1.xpose.msra.mxu0 %v52
    %76 = vmatprep.subr.mxu0 %v55
    %77 = vmatpush1.xpose.msra.mxu0 %v54
    %78 = vmatprep.subr.mxu0 0.0
    %79 = vmatpush1.xpose.msra.mxu0 0.0
    %80 = vmatprep.subr.mxu0 0.0
    %81 = vmatpush1.xpose.msra.mxu0 0.0
    %82 = vmatprep.subr.mxu0 0.0
    %83 = vmatpush1.xpose.msra.mxu0 0.0
    %84 = vmatprep.subr.mxu0 0.0
    %85 = vmatpush1.xpose.msra.mxu0 0.0
    %86 = vmatprep.subr.mxu0 0.0
    %87 = vmatpush1.xpose.msra.mxu0 0.0
    %88 = vmatprep.subr.mxu0 0.0
    %89 = vmatpush1.xpose.msra.mxu0 0.0
    %90 = vmatprep.subr.mxu0 0.0
    %91 = vmatpush1.xpose.msra.mxu0 0.0
    %92 = vmatprep.subr.mxu0 0.0
    %93 = vmatpush1.xpose.msra.mxu0 0.0
    %94 = vmatprep.subr.mxu0 0.0
    %95 = vmatpush1.xpose.msra.mxu0 0.0
    %96 = vmatprep.subr.mxu0 0.0
    %97 = vmatpush1.xpose.msra.mxu0 0.0
    %98 = vmatprep.subr.mxu0 0.0
    %99 = vmatpush1.xpose.msra.mxu0 0.0
    %100 = vmatprep.subr.mxu0 0.0
    %101 = vmatpush1.xpose.msra.mxu0 0.0
    %102 = vmatprep.subr.mxu0 0.0
    %103 = vmatpush1.xpose.msra.mxu0 0.0
    %104 = vmatprep.subr.mxu0 0.0
    %105 = vmatpush1.xpose.msra.mxu0 0.0
    %106 = vmatprep.subr.mxu0 0.0
    %107 = vmatpush1.xpose.msra.mxu0 0.0
    %108 = vmatprep.subr.mxu0 0.0
    %109 = vmatpush1.xpose.msra.mxu0 0.0
    %110 = vmatprep.subr.mxu0 0.0
    %111 = vmatpush1.xpose.msra.mxu0 0.0
    %112 = vmatprep.subr.mxu0 0.0
    %113 = vmatpush1.xpose.msra.mxu0 0.0
    %114 = vmatprep.subr.mxu0 0.0
    %115 = vmatpush1.xpose.msra.mxu0 0.0
    %116 = vmatprep.subr.mxu0 0.0
    %117 = vmatpush1.xpose.msra.mxu0 0.0
    %118 = vmatprep.subr.mxu0 0.0
    %119 = vmatpush1.xpose.msra.mxu0 0.0
    %120 = vmatprep.subr.mxu0 0.0
    %121 = vmatpush1.xpose.msra.mxu0 0.0
    %122 = vmatprep.subr.mxu0 0.0
    %123 = vmatpush1.xpose.msra.mxu0 0.0
    %124 = vmatprep.subr.mxu0 0.0
    %125 = vmatpush1.xpose.msra.mxu0 0.0
    %126 = vmatprep.subr.mxu0 0.0
    %127 = vmatpush1.xpose.msra.mxu0 0.0
    %128 = vmatprep.subr.mxu0 0.0
    %129 = vmatpush1.xpose.msra.mxu0 0.0
    %130 = vmatprep.subr.mxu0 0.0
    %131 = vmatpush1.xpose.msra.mxu0 0.0
    %132 = vmatprep.subr.mxu0 0.0
    %133 = vmatpush1.xpose.msra.mxu0 0.0
    %134 = vmatprep.subr.mxu0 0.0
    %135 = vmatpush1.xpose.msra.mxu0 0.0
    %136 = vmatprep.subr.mxu0 0.0
    %137 = vmatpush1.xpose.msra.mxu0 0.0
    %138 = vmatprep.mubr.f32.mxu0 %v67
    %139 = vmatmul.mubr.f32.gmra.mrb[0].mxu0 %v66
    %v140 = vpop.f32.mrb[0].mxu0
    %v141 = vadd.f32 0.0, %v140
    %v142 = vpop.f32.mrb[0].mxu0
    %143 = vmatprep.mubr.f32.mxu0 %v69
    %144 = vmatmul.mubr.f32.gmra.mrb[0].mxu0 %v68
    %v145 = vpop.f32.mrb[0].mxu0
    %v146 = vadd.f32 0.0, %v145
    %v147 = vpop.f32.mrb[0].mxu0
    %148 = vmatprep.mubr.f32.mxu0 %v71
    %149 = vmatmul.mubr.f32.gmra.mrb[0].mxu0 %v70
    %v150 = vpop.f32.mrb[0].mxu0
    %v151 = vadd.f32 0.0, %v150
    %v152 = vpop.f32.mrb[0].mxu0
    %153 = vmatprep.mubr.f32.mxu0 %v73
    %154 = vmatmul.mubr.f32.gmra.mrb[0].mxu0 %v72
    %v155 = vpop.f32.mrb[0].mxu0
    %v156 = vadd.f32 0.0, %v155
    %v157 = vpop.f32.mrb[0].mxu0
    %158 = vdwg.mxu0
    %v159 = vmul.f32 %v141, 0.0625
    %v160 = vmul.f32 %v146, 0.0625
    %v161 = vmul.f32 %v151, 0.0625
    %v162 = vmul.f32 %v156, 0.0625
    %164 = vset.pattern.permute.xlu0 0
    %165 = vperm.xlu0 %164, %v61
    %v166 = vpop.permute.xlu0 %165
    %169 = vset.pattern.permute.xlu0 0
    %170 = vperm.xlu0 %169, %v62
    %v171 = vpop.permute.xlu0 %170
    %174 = vset.pattern.permute.xlu0 0
    %175 = vperm.xlu0 %174, %v63
    %v176 = vpop.permute.xlu0 %175
    %179 = vset.pattern.permute.xlu0 0
    %180 = vperm.xlu0 %179, %v64
    %v181 = vpop.permute.xlu0 %180
    %184 = vset.pattern.permute.xlu0 0
    %185 = vperm.xlu0 %184, %v65
    %v186 = vpop.permute.xlu0 %185
    %vm188 = vcmask 261120
    %v190 = vsel %vm188, %v56, 0
    %v193 = vsel %vm188, %v57, 0
    %v196 = vsel %vm188, %v58, 0
    %v199 = vsel %vm188, %v59, 0
    %v202 = vsel %vm188, %v60, 0
    %204 = vmatprep.subr.mxu0 0.0
    %205 = vmatpush1.msra.mxu0 %v159
    %206 = vmatprep.subr.mxu0 0.0
    %207 = vmatpush1.msra.mxu0 %v160
    %208 = vmatprep.subr.mxu0 0.0
    %209 = vmatpush1.msra.mxu0 %v161
    %210 = vmatprep.subr.mxu0 0.0
    %211 = vmatpush1.msra.mxu0 %v162
    %212 = vmatprep.subr.mxu0 0.0
    %213 = vmatpush1.msra.mxu0 0.0
    %214 = vmatprep.subr.mxu0 0.0
    %215 = vmatpush1.msra.mxu0 0.0
    %216 = vmatprep.subr.mxu0 0.0
    %217 = vmatpush1.msra.mxu0 0.0
    %218 = vmatprep.subr.mxu0 0.0
    %219 = vmatpush1.msra.mxu0 0.0
    %220 = vmatprep.subr.mxu0 0.0
    %221 = vmatpush1.msra.mxu0 0.0
    %222 = vmatprep.subr.mxu0 0.0
    %223 = vmatpush1.msra.mxu0 0.0
    %224 = vmatprep.subr.mxu0 0.0
    %225 = vmatpush1.msra.mxu0 0.0
    %226 = vmatprep.subr.mxu0 0.0
    %227 = vmatpush1.msra.mxu0 0.0
    %228 = vmatprep.subr.mxu0 0.0
    %229 = vmatpush1.msra.mxu0 0.0
    %230 = vmatprep.subr.mxu0 0.0
    %231 = vmatpush1.msra.mxu0 0.0
    %232 = vmatprep.subr.mxu0 0.0
    %233 = vmatpush1.msra.mxu0 0.0
    %234 = vmatprep.subr.mxu0 0.0
    %235 = vmatpush1.msra.mxu0 0.0
    %236 = vmatprep.subr.mxu0 0.0
    %237 = vmatpush1.msra.mxu0 0.0
    %238 = vmatprep.subr.mxu0 0.0
    %239 = vmatpush1.msra.mxu0 0.0
    %240 = vmatprep.subr.mxu0 0.0
    %241 = vmatpush1.msra.mxu0 0.0
    %242 = vmatprep.subr.mxu0 0.0
    %243 = vmatpush1.msra.mxu0 0.0
    %244 = vmatprep.subr.mxu0 0.0
    %245 = vmatpush1.msra.mxu0 0.0
    %246 = vmatprep.subr.mxu0 0.0
    %247 = vmatpush1.msra.mxu0 0.0
    %248 = vmatprep.subr.mxu0 0.0
    %249 = vmatpush1.msra.mxu0 0.0
    %250 = vmatprep.subr.mxu0 0.0
    %251 = vmatpush1.msra.mxu0 0.0
    %252 = vmatprep.subr.mxu0 0.0
    %253 = vmatpush1.msra.mxu0 0.0
    %254 = vmatprep.subr.mxu0 0.0
    %255 = vmatpush1.msra.mxu0 0.0
    %256 = vmatprep.subr.mxu0 0.0
    %257 = vmatpush1.msra.mxu0 0.0
    %258 = vmatprep.subr.mxu0 0.0
    %259 = vmatpush1.msra.mxu0 0.0
    %260 = vmatprep.subr.mxu0 0.0
    %261 = vmatpush1.msra.mxu0 0.0
    %262 = vmatprep.subr.mxu0 0.0
    %263 = vmatpush1.msra.mxu0 0.0
    %264 = vmatprep.subr.mxu0 0.0
    %265 = vmatpush1.msra.mxu0 0.0
    %266 = vmatprep.subr.mxu0 0.0
    %267 = vmatpush1.msra.mxu0 0.0
    %268 = vmatprep.mubr.f32.mxu0 0.0
    %269 = vmatmul.mubr.f32.gmra.mrb[0].mxu0 %v190
    %v270 = vpop.f32.mrb[0].mxu0
    %v271 = vadd.f32 %v166, %v270
    %v272 = vpop.f32.mrb[0].mxu0
    %273 = vmatprep.mubr.f32.mxu0 0.0
    %274 = vmatmul.mubr.f32.gmra.mrb[0].mxu0 %v193
    %v275 = vpop.f32.mrb[0].mxu0
    %v276 = vadd.f32 %v171, %v275
    %v277 = vpop.f32.mrb[0].mxu0
    %278 = vmatprep.mubr.f32.mxu0 0.0
    %279 = vmatmul.mubr.f32.gmra.mrb[0].mxu0 %v196
    %v280 = vpop.f32.mrb[0].mxu0
    %v281 = vadd.f32 %v176, %v280
    %v282 = vpop.f32.mrb[0].mxu0
    %283 = vmatprep.mubr.f32.mxu0 0.0
    %284 = vmatmul.mubr.f32.gmra.mrb[0].mxu0 %v199
    %v285 = vpop.f32.mrb[0].mxu0
    %v286 = vadd.f32 %v181, %v285
    %v287 = vpop.f32.mrb[0].mxu0
    %288 = vmatprep.mubr.f32.mxu0 0.0
    %289 = vmatmul.mubr.f32.gmra.mrb[0].mxu0 %v202
    %v290 = vpop.f32.mrb[0].mxu0
    %v291 = vadd.f32 %v186, %v290
    %v292 = vpop.f32.mrb[0].mxu0
    %293 = vdwg.mxu0
    %294 = vxpose.xlu0.b32.start [1/16] %v271, 128
    %295 = vxpose.xlu0.b32.cont [2/16] 0.0, 128
    %296 = vxpose.xlu0.b32.cont [3/16] 0.0, 128
    %297 = vxpose.xlu0.b32.cont [4/16] 0.0, 128
    %298 = vxpose.xlu0.b32.cont [5/16] 0.0, 128
    %299 = vxpose.xlu0.b32.cont [6/16] 0.0, 128
    %300 = vxpose.xlu0.b32.cont [7/16] 0.0, 128
    %301 = vxpose.xlu0.b32.cont [8/16] 0.0, 128
    %302 = vxpose.xlu0.b32.cont [9/16] 0.0, 128
    %303 = vxpose.xlu0.b32.cont [10/16] 0.0, 128
    %304 = vxpose.xlu0.b32.cont [11/16] 0.0, 128
    %305 = vxpose.xlu0.b32.cont [12/16] 0.0, 128
    %306 = vxpose.xlu0.b32.cont [13/16] 0.0, 128
    %307 = vxpose.xlu0.b32.cont [14/16] 0.0, 128
    %308 = vxpose.xlu0.b32.cont [15/16] 0.0, 128
    %309 = vxpose.xlu0.b32.end [16/16] 0.0, 128
    %v310 = vpop.trf.xlu0
    %v311 = vpop.trf.xlu0
    %v312 = vpop.trf.xlu0
    %v313 = vpop.trf.xlu0
    %v314 = vpop.trf.xlu0
    %v315 = vpop.trf.xlu0
    %v316 = vpop.trf.xlu0
    %v317 = vpop.trf.xlu0
    %v318 = vpop.trf.xlu0
    %v319 = vpop.trf.xlu0
    %v320 = vpop.trf.xlu0
    %v321 = vpop.trf.xlu0
    %v322 = vpop.trf.xlu0
    %v323 = vpop.trf.xlu0
    %v324 = vpop.trf.xlu0
    %v325 = vpop.trf.xlu0
    %v327 = vrot.slane %v271, 4
    %vm328 = vcmask 31744
    %v330 = vsel %vm328, %v310, 0
    %v333 = vsel %vm328, %v311, 0
    %vm335 = vcmask 1043456
    %v336 = vsel %vm335, %v327, 0
    %338 = vmatprep.subr.mxu0 0.0
    %339 = vmatpush1.msra.mxu0 %v336
    %340 = vmatprep.subr.mxu0 0.0
    %341 = vmatpush1.msra.mxu0 0.0
    %342 = vmatprep.subr.mxu0 0.0
    %343 = vmatpush1.msra.mxu0 0.0
    %344 = vmatprep.subr.mxu0 0.0
    %345 = vmatpush1.msra.mxu0 0.0
    %346 = vmatprep.subr.mxu0 0.0
    %347 = vmatpush1.msra.mxu0 0.0
    %348 = vmatprep.subr.mxu0 0.0
    %349 = vmatpush1.msra.mxu0 0.0
    %350 = vmatprep.subr.mxu0 0.0
    %351 = vmatpush1.msra.mxu0 0.0
    %352 = vmatprep.subr.mxu0 0.0
    %353 = vmatpush1.msra.mxu0 0.0
    %354 = vmatprep.subr.mxu0 0.0
    %355 = vmatpush1.msra.mxu0 0.0
    %356 = vmatprep.subr.mxu0 0.0
    %357 = vmatpush1.msra.mxu0 0.0
    %358 = vmatprep.subr.mxu0 0.0
    %359 = vmatpush1.msra.mxu0 0.0
    %360 = vmatprep.subr.mxu0 0.0
    %361 = vmatpush1.msra.mxu0 0.0
    %362 = vmatprep.subr.mxu0 0.0
    %363 = vmatpush1.msra.mxu0 0.0
    %364 = vmatprep.subr.mxu0 0.0
    %365 = vmatpush1.msra.mxu0 0.0
    %366 = vmatprep.subr.mxu0 0.0
    %367 = vmatpush1.msra.mxu0 0.0
    %368 = vmatprep.subr.mxu0 0.0
    %369 = vmatpush1.msra.mxu0 0.0
    %370 = vmatprep.subr.mxu0 0.0
    %371 = vmatpush1.msra.mxu0 0.0
    %372 = vmatprep.subr.mxu0 0.0
    %373 = vmatpush1.msra.mxu0 0.0
    %374 = vmatprep.subr.mxu0 0.0
    %375 = vmatpush1.msra.mxu0 0.0
    %376 = vmatprep.subr.mxu0 0.0
    %377 = vmatpush1.msra.mxu0 0.0
    %378 = vmatprep.subr.mxu0 0.0
    %379 = vmatpush1.msra.mxu0 0.0
    %380 = vmatprep.subr.mxu0 0.0
    %381 = vmatpush1.msra.mxu0 0.0
    %382 = vmatprep.subr.mxu0 0.0
    %383 = vmatpush1.msra.mxu0 0.0
    %384 = vmatprep.subr.mxu0 0.0
    %385 = vmatpush1.msra.mxu0 0.0
    %386 = vmatprep.subr.mxu0 0.0
    %387 = vmatpush1.msra.mxu0 0.0
    %388 = vmatprep.subr.mxu0 0.0
    %389 = vmatpush1.msra.mxu0 0.0
    %390 = vmatprep.subr.mxu0 0.0
    %391 = vmatpush1.msra.mxu0 0.0
    %392 = vmatprep.subr.mxu0 0.0
    %393 = vmatpush1.msra.mxu0 0.0
    %394 = vmatprep.subr.mxu0 0.0
    %395 = vmatpush1.msra.mxu0 0.0
    %396 = vmatprep.subr.mxu0 0.0
    %397 = vmatpush1.msra.mxu0 0.0
    %398 = vmatprep.subr.mxu0 0.0
    %399 = vmatpush1.msra.mxu0 0.0
    %400 = vmatprep.subr.mxu0 0.0
    %401 = vmatpush1.msra.mxu0 0.0
    %402 = vmatprep.mubr.f32.mxu0 0.0
    %403 = vmatmul.mubr.f32.gmra.mrb[0].mxu0 %v330
    %v404 = vpop.f32.mrb[0].mxu0
    %v405 = vadd.f32 0.0, %v404
    %v406 = vpop.f32.mrb[0].mxu0
    %407 = vmatprep.mubr.f32.mxu0 0.0
    %408 = vmatmul.mubr.f32.gmra.mrb[0].mxu0 %v333
    %v409 = vpop.f32.mrb[0].mxu0
    %v410 = vadd.f32 0.0, %v409
    %v411 = vpop.f32.mrb[0].mxu0
    %412 = vdwg.mxu0
    %vm413 = vcmask 130048
    %v414 = vsel %vm413, %v405, -inf
    %415 = vmax.xlane.f32.xlu0 %v414
    %v416 = vpop.xlane.xlu0 %415
    %v417 = vsel %vm413, %v410, -inf
    %418 = vmax.xlane.f32.xlu0 %v417
    %v419 = vpop.xlane.xlu0 %418
    %v420 = vsub.f32 %v405, %v416
    %v421 = vsub.f32 %v410, %v419
    %v422 = vmul.f32 %v420, 1.442695
    %v423 = vpow.pop %v422
    %v424 = vmul.f32 %v421, 1.442695
    %v425 = vpow.pop %v424
    %v426 = vsel %vm413, %v423, 0.0
    %427 = vadd.xlane.f32.xlu0 %v426
    %v428 = vpop.xlane.xlu0 %427
    %v429 = vsel %vm413, %v425, 0.0
    %430 = vadd.xlane.f32.xlu0 %v429
    %v431 = vpop.xlane.xlu0 %430
    %v432 = vrcp.pop %v428
    %v433 = vrcp.pop %v431
    %v434 = vmul.f32 %v423, %v432
    %v435 = vmul.f32 %v425, %v433
    %v437 = vsel %vm413, %v276, 0
    %v440 = vsel %vm413, %v281, 0
    %v443 = vsel %vm413, %v286, 0
    %v446 = vsel %vm413, %v291, 0
    %v449 = vsel %vm413, %v434, 0
    %v452 = vsel %vm413, %v435, 0
    %454 = vmatprep.subr.mxu0 0.0
    %455 = vmatpush1.xpose.msra.mxu0 %v449
    %456 = vmatprep.subr.mxu0 0.0
    %457 = vmatpush1.xpose.msra.mxu0 %v452
    %458 = vmatprep.subr.mxu0 0.0
    %459 = vmatpush1.xpose.msra.mxu0 0.0
    %460 = vmatprep.subr.mxu0 0.0
    %461 = vmatpush1.xpose.msra.mxu0 0.0
    %462 = vmatprep.subr.mxu0 0.0
    %463 = vmatpush1.xpose.msra.mxu0 0.0
    %464 = vmatprep.subr.mxu0 0.0
    %465 = vmatpush1.xpose.msra.mxu0 0.0
    %466 = vmatprep.subr.mxu0 0.0
    %467 = vmatpush1.xpose.msra.mxu0 0.0
    %468 = vmatprep.subr.mxu0 0.0
    %469 = vmatpush1.xpose.msra.mxu0 0.0
    %470 = vmatprep.subr.mxu0 0.0
    %471 = vmatpush1.xpose.msra.mxu0 0.0
    %472 = vmatprep.subr.mxu0 0.0
    %473 = vmatpush1.xpose.msra.mxu0 0.0
    %474 = vmatprep.subr.mxu0 0.0
    %475 = vmatpush1.xpose.msra.mxu0 0.0
    %476 = vmatprep.subr.mxu0 0.0
    %477 = vmatpush1.xpose.msra.mxu0 0.0
    %478 = vmatprep.subr.mxu0 0.0
    %479 = vmatpush1.xpose.msra.mxu0 0.0
    %480 = vmatprep.subr.mxu0 0.0
    %481 = vmatpush1.xpose.msra.mxu0 0.0
    %482 = vmatprep.subr.mxu0 0.0
    %483 = vmatpush1.xpose.msra.mxu0 0.0
    %484 = vmatprep.subr.mxu0 0.0
    %485 = vmatpush1.xpose.msra.mxu0 0.0
    %486 = vmatprep.subr.mxu0 0.0
    %487 = vmatpush1.xpose.msra.mxu0 0.0
    %488 = vmatprep.subr.mxu0 0.0
    %489 = vmatpush1.xpose.msra.mxu0 0.0
    %490 = vmatprep.subr.mxu0 0.0
    %491 = vmatpush1.xpose.msra.mxu0 0.0
    %492 = vmatprep.subr.mxu0 0.0
    %493 = vmatpush1.xpose.msra.mxu0 0.0
    %494 = vmatprep.subr.mxu0 0.0
    %495 = vmatpush1.xpose.msra.mxu0 0.0
    %496 = vmatprep.subr.mxu0 0.0
    %497 = vmatpush1.xpose.msra.mxu0 0.0
    %498 = vmatprep.subr.mxu0 0.0
    %499 = vmatpush1.xpose.msra.mxu0 0.0
    %500 = vmatprep.subr.mxu0 0.0
    %501 = vmatpush1.xpose.msra.mxu0 0.0
    %502 = vmatprep.subr.mxu0 0.0
    %503 = vmatpush1.xpose.msra.mxu0 0.0
    %504 = vmatprep.subr.mxu0 0.0
    %505 = vmatpush1.xpose.msra.mxu0 0.0
    %506 = vmatprep.subr.mxu0 0.0
    %507 = vmatpush1.xpose.msra.mxu0 0.0
    %508 = vmatprep.subr.mxu0 0.0
    %509 = vmatpush1.xpose.msra.mxu0 0.0
    %510 = vmatprep.subr.mxu0 0.0
    %511 = vmatpush1.xpose.msra.mxu0 0.0
    %512 = vmatprep.subr.mxu0 0.0
    %513 = vmatpush1.xpose.msra.mxu0 0.0
    %514 = vmatprep.subr.mxu0 0.0
    %515 = vmatpush1.xpose.msra.mxu0 0.0
    %516 = vmatprep.subr.mxu0 0.0
    %517 = vmatpush1.xpose.msra.mxu0 0.0
    %518 = vmatprep.mubr.f32.mxu0 0.0
    %519 = vmatmul.mubr.f32.gmra.mrb[0].mxu0 %v437
    %v520 = vpop.f32.mrb[0].mxu0
    %v521 = vadd.f32 0.0, %v520
    %v522 = vpop.f32.mrb[0].mxu0
    %523 = vmatprep.mubr.f32.mxu0 0.0
    %524 = vmatmul.mubr.f32.gmra.mrb[0].mxu0 %v440
    %v525 = vpop.f32.mrb[0].mxu0
    %v526 = vadd.f32 0.0, %v525
    %v527 = vpop.f32.mrb[0].mxu0
    %528 = vmatprep.mubr.f32.mxu0 0.0
    %529 = vmatmul.mubr.f32.gmra.mrb[0].mxu0 %v443
    %v530 = vpop.f32.mrb[0].mxu0
    %v531 = vadd.f32 0.0, %v530
    %v532 = vpop.f32.mrb[0].mxu0
    %533 = vmatprep.mubr.f32.mxu0 0.0
    %534 = vmatmul.mubr.f32.gmra.mrb[0].mxu0 %v446
    %v535 = vpop.f32.mrb[0].mxu0
    %v536 = vadd.f32 0.0, %v535
    %v537 = vpop.f32.mrb[0].mxu0
    %538 = vdwg.mxu0
    %v540 = vsel %vm413, %v521, 0
    %v543 = vsel %vm413, %v526, 0
    %v546 = vsel %vm413, %v531, 0
    %v549 = vsel %vm413, %v536, 0
    %551 = vmatprep.subr.mxu0 %v53
    %552 = vmatpush1.msra.mxu0 %v52
    %553 = vmatprep.subr.mxu0 %v55
    %554 = vmatpush1.msra.mxu0 %v54
    %555 = vmatprep.subr.mxu0 0.0
    %556 = vmatpush1.msra.mxu0 0.0
    %557 = vmatprep.subr.mxu0 0.0
    %558 = vmatpush1.msra.mxu0 0.0
    %559 = vmatprep.subr.mxu0 0.0
    %560 = vmatpush1.msra.mxu0 0.0
    %561 = vmatprep.subr.mxu0 0.0
    %562 = vmatpush1.msra.mxu0 0.0
    %563 = vmatprep.subr.mxu0 0.0
    %564 = vmatpush1.msra.mxu0 0.0
    %565 = vmatprep.subr.mxu0 0.0
    %566 = vmatpush1.msra.mxu0 0.0
    %567 = vmatprep.subr.mxu0 0.0
    %568 = vmatpush1.msra.mxu0 0.0
    %569 = vmatprep.subr.mxu0 0.0
    %570 = vmatpush1.msra.mxu0 0.0
    %571 = vmatprep.subr.mxu0 0.0
    %572 = vmatpush1.msra.mxu0 0.0
    %573 = vmatprep.subr.mxu0 0.0
    %574 = vmatpush1.msra.mxu0 0.0
    %575 = vmatprep.subr.mxu0 0.0
    %576 = vmatpush1.msra.mxu0 0.0
    %577 = vmatprep.subr.mxu0 0.0
    %578 = vmatpush1.msra.mxu0 0.0
    %579 = vmatprep.subr.mxu0 0.0
    %580 = vmatpush1.msra.mxu0 0.0
    %581 = vmatprep.subr.mxu0 0.0
    %582 = vmatpush1.msra.mxu0 0.0
    %583 = vmatprep.subr.mxu0 0.0
    %584 = vmatpush1.msra.mxu0 0.0
    %585 = vmatprep.subr.mxu0 0.0
    %586 = vmatpush1.msra.mxu0 0.0
    %587 = vmatprep.subr.mxu0 0.0
    %588 = vmatpush1.msra.mxu0 0.0
    %589 = vmatprep.subr.mxu0 0.0
    %590 = vmatpush1.msra.mxu0 0.0
    %591 = vmatprep.subr.mxu0 0.0
    %592 = vmatpush1.msra.mxu0 0.0
    %593 = vmatprep.subr.mxu0 0.0
    %594 = vmatpush1.msra.mxu0 0.0
    %595 = vmatprep.subr.mxu0 0.0
    %596 = vmatpush1.msra.mxu0 0.0
    %597 = vmatprep.subr.mxu0 0.0
    %598 = vmatpush1.msra.mxu0 0.0
    %599 = vmatprep.subr.mxu0 0.0
    %600 = vmatpush1.msra.mxu0 0.0
    %601 = vmatprep.subr.mxu0 0.0
    %602 = vmatpush1.msra.mxu0 0.0
    %603 = vmatprep.subr.mxu0 0.0
    %604 = vmatpush1.msra.mxu0 0.0
    %605 = vmatprep.subr.mxu0 0.0
    %606 = vmatpush1.msra.mxu0 0.0
    %607 = vmatprep.subr.mxu0 0.0
    %608 = vmatpush1.msra.mxu0 0.0
    %609 = vmatprep.subr.mxu0 0.0
    %610 = vmatpush1.msra.mxu0 0.0
    %611 = vmatprep.subr.mxu0 0.0
    %612 = vmatpush1.msra.mxu0 0.0
    %613 = vmatprep.subr.mxu0 0.0
    %614 = vmatpush1.msra.mxu0 0.0
    %615 = vmatprep.mubr.f32.mxu0 0.0
    %616 = vmatmul.mubr.f32.gmra.mrb[0].mxu0 %v540
    %v617 = vpop.f32.mrb[0].mxu0
    %v618 = vadd.f32 %v66, %v617
    %v619 = vpop.f32.mrb[0].mxu0
    %v620 = vadd.f32 %v67, %v619
    %621 = vmatprep.mubr.f32.mxu0 0.0
    %622 = vmatmul.mubr.f32.gmra.mrb[0].mxu0 %v543
    %v623 = vpop.f32.mrb[0].mxu0
    %v624 = vadd.f32 %v68, %v623
    %v625 = vpop.f32.mrb[0].mxu0
    %v626 = vadd.f32 %v69, %v625
    %627 = vmatprep.mubr.f32.mxu0 0.0
    %628 = vmatmul.mubr.f32.gmra.mrb[0].mxu0 %v546
    %v629 = vpop.f32.mrb[0].mxu0
    %v630 = vadd.f32 %v70, %v629
    %v631 = vpop.f32.mrb[0].mxu0
    %v632 = vadd.f32 %v71, %v631
    %633 = vmatprep.mubr.f32.mxu0 0.0
    %634 = vmatmul.mubr.f32.gmra.mrb[0].mxu0 %v549
    %v635 = vpop.f32.mrb[0].mxu0
    %v636 = vadd.f32 %v72, %v635
    %v637 = vpop.f32.mrb[0].mxu0
    %v638 = vadd.f32 %v73, %v637
    %639 = vdwg.mxu0
    %640 = vst [vmem:[#allocation5] sm:$0xff] %v618
    %641 = vst [vmem:[#allocation5 + $0x8] sm:$0xff] %v620
    %642 = vst [vmem:[#allocation5 + $0x10] sm:$0xff] %v624
    %643 = vst [vmem:[#allocation5 + $0x18] sm:$0xff] %v626
    %644 = vst [vmem:[#allocation5 + $0x20] sm:$0xff] %v630
    %645 = vst [vmem:[#allocation5 + $0x28] sm:$0xff] %v632
    %646 = vst [vmem:[#allocation5 + $0x30] sm:$0xff] %v636
    %647 = vst [vmem:[#allocation5 + $0x38] sm:$0xff] %v638
    %s648 = scalar_lea.vmem [#allocation2], 64
    %v649 = vld [vmem:[%s648] sm:$0xff]
    %v650 = vld [vmem:[%s648 + $0x8] sm:$0xff]
    %v651 = vld [vmem:[%s648 + $0x10] sm:$0xff]
    %v652 = vld [vmem:[%s648 + $0x18] sm:$0xff]
    %v653 = vld [vmem:[%s648 + $0x20] sm:$0xff]
    %v654 = vld [vmem:[%s648 + $0x28] sm:$0xff]
    %v655 = vld [vmem:[%s648 + $0x30] sm:$0xff]
    %v656 = vld [vmem:[%s648 + $0x38] sm:$0xff]
    %657 = vmatprep.subr.mxu0 %v53
    %658 = vmatpush1.xpose.msra.mxu0 %v52
    %659 = vmatprep.subr.mxu0 %v55
    %660 = vmatpush1.xpose.msra.mxu0 %v54
    %661 = vmatprep.subr.mxu0 0.0
    %662 = vmatpush1.xpose.msra.mxu0 0.0
    %663 = vmatprep.subr.mxu0 0.0
    %664 = vmatpush1.xpose.msra.mxu0 0.0
    %665 = vmatprep.subr.mxu0 0.0
    %666 = vmatpush1.xpose.msra.mxu0 0.0
    %667 = vmatprep.subr.mxu0 0.0
    %668 = vmatpush1.xpose.msra.mxu0 0.0
    %669 = vmatprep.subr.mxu0 0.0
    %670 = vmatpush1.xpose.msra.mxu0 0.0
    %671 = vmatprep.subr.mxu0 0.0
    %672 = vmatpush1.xpose.msra.mxu0 0.0
    %673 = vmatprep.subr.mxu0 0.0
    %674 = vmatpush1.xpose.msra.mxu0 0.0
    %675 = vmatprep.subr.mxu0 0.0
    %676 = vmatpush1.xpose.msra.mxu0 0.0
    %677 = vmatprep.subr.mxu0 0.0
    %678 = vmatpush1.xpose.msra.mxu0 0.0
    %679 = vmatprep.subr.mxu0 0.0
    %680 = vmatpush1.xpose.msra.mxu0 0.0
    %681 = vmatprep.subr.mxu0 0.0
    %682 = vmatpush1.xpose.msra.mxu0 0.0
    %683 = vmatprep.subr.mxu0 0.0
    %684 = vmatpush1.xpose.msra.mxu0 0.0
    %685 = vmatprep.subr.mxu0 0.0
    %686 = vmatpush1.xpose.msra.mxu0 0.0
    %687 = vmatprep.subr.mxu0 0.0
    %688 = vmatpush1.xpose.msra.mxu0 0.0
    %689 = vmatprep.subr.mxu0 0.0
    %690 = vmatpush1.xpose.msra.mxu0 0.0
    %691 = vmatprep.subr.mxu0 0.0
    %692 = vmatpush1.xpose.msra.mxu0 0.0
    %693 = vmatprep.subr.mxu0 0.0
    %694 = vmatpush1.xpose.msra.mxu0 0.0
    %695 = vmatprep.subr.mxu0 0.0
    %696 = vmatpush1.xpose.msra.mxu0 0.0
    %697 = vmatprep.subr.mxu0 0.0
    %698 = vmatpush1.xpose.msra.mxu0 0.0
    %699 = vmatprep.subr.mxu0 0.0
    %700 = vmatpush1.xpose.msra.mxu0 0.0
    %701 = vmatprep.subr.mxu0 0.0
    %702 = vmatpush1.xpose.msra.mxu0 0.0
    %703 = vmatprep.subr.mxu0 0.0
    %704 = vmatpush1.xpose.msra.mxu0 0.0
    %705 = vmatprep.subr.mxu0 0.0
    %706 = vmatpush1.xpose.msra.mxu0 0.0
    %707 = vmatprep.subr.mxu0 0.0
    %708 = vmatpush1.xpose.msra.mxu0 0.0
    %709 = vmatprep.subr.mxu0 0.0
    %710 = vmatpush1.xpose.msra.mxu0 0.0
    %711 = vmatprep.subr.mxu0 0.0
    %712 = vmatpush1.xpose.msra.mxu0 0.0
    %713 = vmatprep.subr.mxu0 0.0
    %714 = vmatpush1.xpose.msra.mxu0 0.0
    %715 = vmatprep.subr.mxu0 0.0
    %716 = vmatpush1.xpose.msra.mxu0 0.0
    %717 = vmatprep.subr.mxu0 0.0
    %718 = vmatpush1.xpose.msra.mxu0 0.0
    %719 = vmatprep.subr.mxu0 0.0
    %720 = vmatpush1.xpose.msra.mxu0 0.0
    %721 = vmatprep.mubr.f32.mxu0 %v650
    %722 = vmatmul.mubr.f32.gmra.mrb[0].mxu0 %v649
    %v723 = vpop.f32.mrb[0].mxu0
    %v724 = vadd.f32 0.0, %v723
    %v725 = vpop.f32.mrb[0].mxu0
    %726 = vmatprep.mubr.f32.mxu0 %v652
    %727 = vmatmul.mubr.f32.gmra.mrb[0].mxu0 %v651
    %v728 = vpop.f32.mrb[0].mxu0
    %v729 = vadd.f32 0.0, %v728
    %v730 = vpop.f32.mrb[0].mxu0
    %731 = vmatprep.mubr.f32.mxu0 %v654
    %732 = vmatmul.mubr.f32.gmra.mrb[0].mxu0 %v653
    %v733 = vpop.f32.mrb[0].mxu0
    %v734 = vadd.f32 0.0, %v733
    %v735 = vpop.f32.mrb[0].mxu0
    %736 = vmatprep.mubr.f32.mxu0 %v656
    %737 = vmatmul.mubr.f32.gmra.mrb[0].mxu0 %v655
    %v738 = vpop.f32.mrb[0].mxu0
    %v739 = vadd.f32 0.0, %v738
    %v740 = vpop.f32.mrb[0].mxu0
    %741 = vdwg.mxu0
    %v742 = vmul.f32 %v724, 0.0625
    %v743 = vmul.f32 %v729, 0.0625
    %v744 = vmul.f32 %v734, 0.0625
    %v745 = vmul.f32 %v739, 0.0625
    %746 = vmatprep.subr.mxu0 0.0
    %747 = vmatpush1.msra.mxu0 %v742
    %748 = vmatprep.subr.mxu0 0.0
    %749 = vmatpush1.msra.mxu0 %v743
    %750 = vmatprep.subr.mxu0 0.0
    %751 = vmatpush1.msra.mxu0 %v744
    %752 = vmatprep.subr.mxu0 0.0
    %753 = vmatpush1.msra.mxu0 %v745
    %754 = vmatprep.subr.mxu0 0.0
    %755 = vmatpush1.msra.mxu0 0.0
    %756 = vmatprep.subr.mxu0 0.0
    %757 = vmatpush1.msra.mxu0 0.0
    %758 = vmatprep.subr.mxu0 0.0
    %759 = vmatpush1.msra.mxu0 0.0
    %760 = vmatprep.subr.mxu0 0.0
    %761 = vmatpush1.msra.mxu0 0.0
    %762 = vmatprep.subr.mxu0 0.0
    %763 = vmatpush1.msra.mxu0 0.0
    %764 = vmatprep.subr.mxu0 0.0
    %765 = vmatpush1.msra.mxu0 0.0
    %766 = vmatprep.subr.mxu0 0.0
    %767 = vmatpush1.msra.mxu0 0.0
    %768 = vmatprep.subr.mxu0 0.0
    %769 = vmatpush1.msra.mxu0 0.0
    %770 = vmatprep.subr.mxu0 0.0
    %771 = vmatpush1.msra.mxu0 0.0
    %772 = vmatprep.subr.mxu0 0.0
    %773 = vmatpush1.msra.mxu0 0.0
    %774 = vmatprep.subr.mxu0 0.0
    %775 = vmatpush1.msra.mxu0 0.0
    %776 = vmatprep.subr.mxu0 0.0
    %777 = vmatpush1.msra.mxu0 0.0
    %778 = vmatprep.subr.mxu0 0.0
    %779 = vmatpush1.msra.mxu0 0.0
    %780 = vmatprep.subr.mxu0 0.0
    %781 = vmatpush1.msra.mxu0 0.0
    %782 = vmatprep.subr.mxu0 0.0
    %783 = vmatpush1.msra.mxu0 0.0
    %784 = vmatprep.subr.mxu0 0.0
    %785 = vmatpush1.msra.mxu0 0.0
    %786 = vmatprep.subr.mxu0 0.0
    %787 = vmatpush1.msra.mxu0 0.0
    %788 = vmatprep.subr.mxu0 0.0
    %789 = vmatpush1.msra.mxu0 0.0
    %790 = vmatprep.subr.mxu0 0.0
    %791 = vmatpush1.msra.mxu0 0.0
    %792 = vmatprep.subr.mxu0 0.0
    %793 = vmatpush1.msra.mxu0 0.0
    %794 = vmatprep.subr.mxu0 0.0
    %795 = vmatpush1.msra.mxu0 0.0
    %796 = vmatprep.subr.mxu0 0.0
    %797 = vmatpush1.msra.mxu0 0.0
    %798 = vmatprep.subr.mxu0 0.0
    %799 = vmatpush1.msra.mxu0 0.0
    %800 = vmatprep.subr.mxu0 0.0
    %801 = vmatpush1.msra.mxu0 0.0
    %802 = vmatprep.subr.mxu0 0.0
    %803 = vmatpush1.msra.mxu0 0.0
    %804 = vmatprep.subr.mxu0 0.0
    %805 = vmatpush1.msra.mxu0 0.0
    %806 = vmatprep.subr.mxu0 0.0
    %807 = vmatpush1.msra.mxu0 0.0
    %808 = vmatprep.subr.mxu0 0.0
    %809 = vmatpush1.msra.mxu0 0.0
    %810 = vmatprep.mubr.f32.mxu0 0.0
    %811 = vmatmul.mubr.f32.gmra.mrb[0].mxu0 %v190
    %v812 = vpop.f32.mrb[0].mxu0
    %v813 = vadd.f32 %v166, %v812
    %v814 = vpop.f32.mrb[0].mxu0
    %815 = vmatprep.mubr.f32.mxu0 0.0
    %816 = vmatmul.mubr.f32.gmra.mrb[0].mxu0 %v193
    %v817 = vpop.f32.mrb[0].mxu0
    %v818 = vadd.f32 %v171, %v817
    %v819 = vpop.f32.mrb[0].mxu0
    %820 = vmatprep.mubr.f32.mxu0 0.0
    %821 = vmatmul.mubr.f32.gmra.mrb[0].mxu0 %v196
    %v822 = vpop.f32.mrb[0].mxu0
    %v823 = vadd.f32 %v176, %v822
    %v824 = vpop.f32.mrb[0].mxu0
    %825 = vmatprep.mubr.f32.mxu0 0.0
    %826 = vmatmul.mubr.f32.gmra.mrb[0].mxu0 %v199
    %v827 = vpop.f32.mrb[0].mxu0
    %v828 = vadd.f32 %v181, %v827
    %v829 = vpop.f32.mrb[0].mxu0
    %830 = vmatprep.mubr.f32.mxu0 0.0
    %831 = vmatmul.mubr.f32.gmra.mrb[0].mxu0 %v202
    %v832 = vpop.f32.mrb[0].mxu0
    %v833 = vadd.f32 %v186, %v832
    %v834 = vpop.f32.mrb[0].mxu0
    %835 = vdwg.mxu0
    %836 = vxpose.xlu0.b32.start [1/16] %v813, 128
    %837 = vxpose.xlu0.b32.cont [2/16] 0.0, 128
    %838 = vxpose.xlu0.b32.cont [3/16] 0.0, 128
    %839 = vxpose.xlu0.b32.cont [4/16] 0.0, 128
    %840 = vxpose.xlu0.b32.cont [5/16] 0.0, 128
    %841 = vxpose.xlu0.b32.cont [6/16] 0.0, 128
    %842 = vxpose.xlu0.b32.cont [7/16] 0.0, 128
    %843 = vxpose.xlu0.b32.cont [8/16] 0.0, 128
    %844 = vxpose.xlu0.b32.cont [9/16] 0.0, 128
    %845 = vxpose.xlu0.b32.cont [10/16] 0.0, 128
    %846 = vxpose.xlu0.b32.cont [11/16] 0.0, 128
    %847 = vxpose.xlu0.b32.cont [12/16] 0.0, 128
    %848 = vxpose.xlu0.b32.cont [13/16] 0.0, 128
    %849 = vxpose.xlu0.b32.cont [14/16] 0.0, 128
    %850 = vxpose.xlu0.b32.cont [15/16] 0.0, 128
    %851 = vxpose.xlu0.b32.end [16/16] 0.0, 128
    %v852 = vpop.trf.xlu0
    %v853 = vpop.trf.xlu0
    %v854 = vpop.trf.xlu0
    %v855 = vpop.trf.xlu0
    %v856 = vpop.trf.xlu0
    %v857 = vpop.trf.xlu0
    %v858 = vpop.trf.xlu0
    %v859 = vpop.trf.xlu0
    %v860 = vpop.trf.xlu0
    %v861 = vpop.trf.xlu0
    %v862 = vpop.trf.xlu0
    %v863 = vpop.trf.xlu0
    %v864 = vpop.trf.xlu0
    %v865 = vpop.trf.xlu0
    %v866 = vpop.trf.xlu0
    %v867 = vpop.trf.xlu0
    %v869 = vrot.slane %v813, 4
    %v871 = vsel %vm328, %v852, 0
    %v874 = vsel %vm328, %v853, 0
    %v876 = vsel %vm335, %v869, 0
    %878 = vmatprep.subr.mxu0 0.0
    %879 = vmatpush1.msra.mxu0 %v876
    %880 = vmatprep.subr.mxu0 0.0
    %881 = vmatpush1.msra.mxu0 0.0
    %882 = vmatprep.subr.mxu0 0.0
    %883 = vmatpush1.msra.mxu0 0.0
    %884 = vmatprep.subr.mxu0 0.0
    %885 = vmatpush1.msra.mxu0 0.0
    %886 = vmatprep.subr.mxu0 0.0
    %887 = vmatpush1.msra.mxu0 0.0
    %888 = vmatprep.subr.mxu0 0.0
    %889 = vmatpush1.msra.mxu0 0.0
    %890 = vmatprep.subr.mxu0 0.0
    %891 = vmatpush1.msra.mxu0 0.0
    %892 = vmatprep.subr.mxu0 0.0
    %893 = vmatpush1.msra.mxu0 0.0
    %894 = vmatprep.subr.mxu0 0.0
    %895 = vmatpush1.msra.mxu0 0.0
    %896 = vmatprep.subr.mxu0 0.0
    %897 = vmatpush1.msra.mxu0 0.0
    %898 = vmatprep.subr.mxu0 0.0
    %899 = vmatpush1.msra.mxu0 0.0
    %900 = vmatprep.subr.mxu0 0.0
    %901 = vmatpush1.msra.mxu0 0.0
    %902 = vmatprep.subr.mxu0 0.0
    %903 = vmatpush1.msra.mxu0 0.0
    %904 = vmatprep.subr.mxu0 0.0
    %905 = vmatpush1.msra.mxu0 0.0
    %906 = vmatprep.subr.mxu0 0.0
    %907 = vmatpush1.msra.mxu0 0.0
    %908 = vmatprep.subr.mxu0 0.0
    %909 = vmatpush1.msra.mxu0 0.0
    %910 = vmatprep.subr.mxu0 0.0
    %911 = vmatpush1.msra.mxu0 0.0
    %912 = vmatprep.subr.mxu0 0.0
    %913 = vmatpush1.msra.mxu0 0.0
    %914 = vmatprep.subr.mxu0 0.0
    %915 = vmatpush1.msra.mxu0 0.0
    %916 = vmatprep.subr.mxu0 0.0
    %917 = vmatpush1.msra.mxu0 0.0
    %918 = vmatprep.subr.mxu0 0.0
    %919 = vmatpush1.msra.mxu0 0.0
    %920 = vmatprep.subr.mxu0 0.0
    %921 = vmatpush1.msra.mxu0 0.0
    %922 = vmatprep.subr.mxu0 0.0
    %923 = vmatpush1.msra.mxu0 0.0
    %924 = vmatprep.subr.mxu0 0.0
    %925 = vmatpush1.msra.mxu0 0.0
    %926 = vmatprep.subr.mxu0 0.0
    %927 = vmatpush1.msra.mxu0 0.0
    %928 = vmatprep.subr.mxu0 0.0
    %929 = vmatpush1.msra.mxu0 0.0
    %930 = vmatprep.subr.mxu0 0.0
    %931 = vmatpush1.msra.mxu0 0.0
    %932 = vmatprep.subr.mxu0 0.0
    %933 = vmatpush1.msra.mxu0 0.0
    %934 = vmatprep.subr.mxu0 0.0
    %935 = vmatpush1.msra.mxu0 0.0
    %936 = vmatprep.subr.mxu0 0.0
    %937 = vmatpush1.msra.mxu0 0.0
    %938 = vmatprep.subr.mxu0 0.0
    %939 = vmatpush1.msra.mxu0 0.0
    %940 = vmatprep.subr.mxu0 0.0
    %941 = vmatpush1.msra.mxu0 0.0
    %942 = vmatprep.mubr.f32.mxu0 0.0
    %943 = vmatmul.mubr.f32.gmra.mrb[0].mxu0 %v871
    %v944 = vpop.f32.mrb[0].mxu0
    %v945 = vadd.f32 0.0, %v944
    %v946 = vpop.f32.mrb[0].mxu0
    %947 = vmatprep.mubr.f32.mxu0 0.0
    %948 = vmatmul.mubr.f32.gmra.mrb[0].mxu0 %v874
    %v949 = vpop.f32.mrb[0].mxu0
    %v950 = vadd.f32 0.0, %v949
    %v951 = vpop.f32.mrb[0].mxu0
    %952 = vdwg.mxu0
    %v953 = vsel %vm413, %v945, -inf
    %954 = vmax.xlane.f32.xlu0 %v953
    %v955 = vpop.xlane.xlu0 %954
    %v956 = vsel %vm413, %v950, -inf
    %957 = vmax.xlane.f32.xlu0 %v956
    %v958 = vpop.xlane.xlu0 %957
    %v959 = vsub.f32 %v945, %v955
    %v960 = vsub.f32 %v950, %v958
    %v961 = vmul.f32 %v959, 1.442695
    %v962 = vpow.pop %v961
    %v963 = vmul.f32 %v960, 1.442695
    %v964 = vpow.pop %v963
    %v965 = vsel %vm413, %v962, 0.0
    %966 = vadd.xlane.f32.xlu0 %v965
    %v967 = vpop.xlane.xlu0 %966
    %v968 = vsel %vm413, %v964, 0.0
    %969 = vadd.xlane.f32.xlu0 %v968
    %v970 = vpop.xlane.xlu0 %969
    %v971 = vrcp.pop %v967
    %v972 = vrcp.pop %v970
    %v973 = vmul.f32 %v962, %v971
    %v974 = vmul.f32 %v964, %v972
    %v976 = vsel %vm413, %v818, 0
    %v979 = vsel %vm413, %v823, 0
    %v982 = vsel %vm413, %v828, 0
    %v985 = vsel %vm413, %v833, 0
    %v988 = vsel %vm413, %v973, 0
    %v991 = vsel %vm413, %v974, 0
    %993 = vmatprep.subr.mxu0 0.0
    %994 = vmatpush1.xpose.msra.mxu0 %v988
    %995 = vmatprep.subr.mxu0 0.0
    %996 = vmatpush1.xpose.msra.mxu0 %v991
    %997 = vmatprep.subr.mxu0 0.0
    %998 = vmatpush1.xpose.msra.mxu0 0.0
    %999 = vmatprep.subr.mxu0 0.0
    %1000 = vmatpush1.xpose.msra.mxu0 0.0
    %1001 = vmatprep.subr.mxu0 0.0
    %1002 = vmatpush1.xpose.msra.mxu0 0.0
    %1003 = vmatprep.subr.mxu0 0.0
    %1004 = vmatpush1.xpose.msra.mxu0 0.0
    %1005 = vmatprep.subr.mxu0 0.0
    %1006 = vmatpush1.xpose.msra.mxu0 0.0
    %1007 = vmatprep.subr.mxu0 0.0
    %1008 = vmatpush1.xpose.msra.mxu0 0.0
    %1009 = vmatprep.subr.mxu0 0.0
    %1010 = vmatpush1.xpose.msra.mxu0 0.0
    %1011 = vmatprep.subr.mxu0 0.0
    %1012 = vmatpush1.xpose.msra.mxu0 0.0
    %1013 = vmatprep.subr.mxu0 0.0
    %1014 = vmatpush1.xpose.msra.mxu0 0.0
    %1015 = vmatprep.subr.mxu0 0.0
    %1016 = vmatpush1.xpose.msra.mxu0 0.0
    %1017 = vmatprep.subr.mxu0 0.0
    %1018 = vmatpush1.xpose.msra.mxu0 0.0
    %1019 = vmatprep.subr.mxu0 0.0
    %1020 = vmatpush1.xpose.msra.mxu0 0.0
    %1021 = vmatprep.subr.mxu0 0.0
    %1022 = vmatpush1.xpose.msra.mxu0 0.0
    %1023 = vmatprep.subr.mxu0 0.0
    %1024 = vmatpush1.xpose.msra.mxu0 0.0
    %1025 = vmatprep.subr.mxu0 0.0
    %1026 = vmatpush1.xpose.msra.mxu0 0.0
    %1027 = vmatprep.subr.mxu0 0.0
    %1028 = vmatpush1.xpose.msra.mxu0 0.0
    %1029 = vmatprep.subr.mxu0 0.0
    %1030 = vmatpush1.xpose.msra.mxu0 0.0
    %1031 = vmatprep.subr.mxu0 0.0
    %1032 = vmatpush1.xpose.msra.mxu0 0.0
    %1033 = vmatprep.subr.mxu0 0.0
    %1034 = vmatpush1.xpose.msra.mxu0 0.0
    %1035 = vmatprep.subr.mxu0 0.0
    %1036 = vmatpush1.xpose.msra.mxu0 0.0
    %1037 = vmatprep.subr.mxu0 0.0
    %1038 = vmatpush1.xpose.msra.mxu0 0.0
    %1039 = vmatprep.subr.mxu0 0.0
    %1040 = vmatpush1.xpose.msra.mxu0 0.0
    %1041 = vmatprep.subr.mxu0 0.0
    %1042 = vmatpush1.xpose.msra.mxu0 0.0
    %1043 = vmatprep.subr.mxu0 0.0
    %1044 = vmatpush1.xpose.msra.mxu0 0.0
    %1045 = vmatprep.subr.mxu0 0.0
    %1046 = vmatpush1.xpose.msra.mxu0 0.0
    %1047 = vmatprep.subr.mxu0 0.0
    %1048 = vmatpush1.xpose.msra.mxu0 0.0
    %1049 = vmatprep.subr.mxu0 0.0
    %1050 = vmatpush1.xpose.msra.mxu0 0.0
    %1051 = vmatprep.subr.mxu0 0.0
    %1052 = vmatpush1.xpose.msra.mxu0 0.0
    %1053 = vmatprep.subr.mxu0 0.0
    %1054 = vmatpush1.xpose.msra.mxu0 0.0
    %1055 = vmatprep.subr.mxu0 0.0
    %1056 = vmatpush1.xpose.msra.mxu0 0.0
    %1057 = vmatprep.mubr.f32.mxu0 0.0
    %1058 = vmatmul.mubr.f32.gmra.mrb[0].mxu0 %v976
    %v1059 = vpop.f32.mrb[0].mxu0
    %v1060 = vadd.f32 0.0, %v1059
    %v1061 = vpop.f32.mrb[0].mxu0
    %1062 = vmatprep.mubr.f32.mxu0 0.0
    %1063 = vmatmul.mubr.f32.gmra.mrb[0].mxu0 %v979
    %v1064 = vpop.f32.mrb[0].mxu0
    %v1065 = vadd.f32 0.0, %v1064
    %v1066 = vpop.f32.mrb[0].mxu0
    %1067 = vmatprep.mubr.f32.mxu0 0.0
    %1068 = vmatmul.mubr.f32.gmra.mrb[0].mxu0 %v982
    %v1069 = vpop.f32.mrb[0].mxu0
    %v1070 = vadd.f32 0.0, %v1069
    %v1071 = vpop.f32.mrb[0].mxu0
    %1072 = vmatprep.mubr.f32.mxu0 0.0
    %1073 = vmatmul.mubr.f32.gmra.mrb[0].mxu0 %v985
    %v1074 = vpop.f32.mrb[0].mxu0
    %v1075 = vadd.f32 0.0, %v1074
    %v1076 = vpop.f32.mrb[0].mxu0
    %1077 = vdwg.mxu0
    %v1079 = vsel %vm413, %v1060, 0
    %v1082 = vsel %vm413, %v1065, 0
    %v1085 = vsel %vm413, %v1070, 0
    %v1088 = vsel %vm413, %v1075, 0
    %1090 = vmatprep.subr.mxu0 %v53
    %1091 = vmatpush1.msra.mxu0 %v52
    %1092 = vmatprep.subr.mxu0 %v55
    %1093 = vmatpush1.msra.mxu0 %v54
    %1094 = vmatprep.subr.mxu0 0.0
    %1095 = vmatpush1.msra.mxu0 0.0
    %1096 = vmatprep.subr.mxu0 0.0
    %1097 = vmatpush1.msra.mxu0 0.0
    %1098 = vmatprep.subr.mxu0 0.0
    %1099 = vmatpush1.msra.mxu0 0.0
    %1100 = vmatprep.subr.mxu0 0.0
    %1101 = vmatpush1.msra.mxu0 0.0
    %1102 = vmatprep.subr.mxu0 0.0
    %1103 = vmatpush1.msra.mxu0 0.0
    %1104 = vmatprep.subr.mxu0 0.0
    %1105 = vmatpush1.msra.mxu0 0.0
    %1106 = vmatprep.subr.mxu0 0.0
    %1107 = vmatpush1.msra.mxu0 0.0
    %1108 = vmatprep.subr.mxu0 0.0
    %1109 = vmatpush1.msra.mxu0 0.0
    %1110 = vmatprep.subr.mxu0 0.0
    %1111 = vmatpush1.msra.mxu0 0.0
    %1112 = vmatprep.subr.mxu0 0.0
    %1113 = vmatpush1.msra.mxu0 0.0
    %1114 = vmatprep.subr.mxu0 0.0
    %1115 = vmatpush1.msra.mxu0 0.0
    %1116 = vmatprep.subr.mxu0 0.0
    %1117 = vmatpush1.msra.mxu0 0.0
    %1118 = vmatprep.subr.mxu0 0.0
    %1119 = vmatpush1.msra.mxu0 0.0
    %1120 = vmatprep.subr.mxu0 0.0
    %1121 = vmatpush1.msra.mxu0 0.0
    %1122 = vmatprep.subr.mxu0 0.0
    %1123 = vmatpush1.msra.mxu0 0.0
    %1124 = vmatprep.subr.mxu0 0.0
    %1125 = vmatpush1.msra.mxu0 0.0
    %1126 = vmatprep.subr.mxu0 0.0
    %1127 = vmatpush1.msra.mxu0 0.0
    %1128 = vmatprep.subr.mxu0 0.0
    %1129 = vmatpush1.msra.mxu0 0.0
    %1130 = vmatprep.subr.mxu0 0.0
    %1131 = vmatpush1.msra.mxu0 0.0
    %1132 = vmatprep.subr.mxu0 0.0
    %1133 = vmatpush1.msra.mxu0 0.0
    %1134 = vmatprep.subr.mxu0 0.0
    %1135 = vmatpush1.msra.mxu0 0.0
    %1136 = vmatprep.subr.mxu0 0.0
    %1137 = vmatpush1.msra.mxu0 0.0
    %1138 = vmatprep.subr.mxu0 0.0
    %1139 = vmatpush1.msra.mxu0 0.0
    %1140 = vmatprep.subr.mxu0 0.0
    %1141 = vmatpush1.msra.mxu0 0.0
    %1142 = vmatprep.subr.mxu0 0.0
    %1143 = vmatpush1.msra.mxu0 0.0
    %1144 = vmatprep.subr.mxu0 0.0
    %1145 = vmatpush1.msra.mxu0 0.0
    %1146 = vmatprep.subr.mxu0 0.0
    %1147 = vmatpush1.msra.mxu0 0.0
    %1148 = vmatprep.subr.mxu0 0.0
    %1149 = vmatpush1.msra.mxu0 0.0
    %1150 = vmatprep.subr.mxu0 0.0
    %1151 = vmatpush1.msra.mxu0 0.0
    %1152 = vmatprep.subr.mxu0 0.0
    %1153 = vmatpush1.msra.mxu0 0.0
    %1154 = vmatprep.mubr.f32.mxu0 0.0
    %1155 = vmatmul.mubr.f32.gmra.mrb[0].mxu0 %v1079
    %v1156 = vpop.f32.mrb[0].mxu0
    %v1157 = vadd.f32 %v649, %v1156
    %v1158 = vpop.f32.mrb[0].mxu0
    %v1159 = vadd.f32 %v650, %v1158
    %1160 = vmatprep.mubr.f32.mxu0 0.0
    %1161 = vmatmul.mubr.f32.gmra.mrb[0].mxu0 %v1082
    %v1162 = vpop.f32.mrb[0].mxu0
    %v1163 = vadd.f32 %v651, %v1162
    %v1164 = vpop.f32.mrb[0].mxu0
    %v1165 = vadd.f32 %v652, %v1164
    %1166 = vmatprep.mubr.f32.mxu0 0.0
    %1167 = vmatmul.mubr.f32.gmra.mrb[0].mxu0 %v1085
    %v1168 = vpop.f32.mrb[0].mxu0
    %v1169 = vadd.f32 %v653, %v1168
    %v1170 = vpop.f32.mrb[0].mxu0
    %v1171 = vadd.f32 %v654, %v1170
    %1172 = vmatprep.mubr.f32.mxu0 0.0
    %1173 = vmatmul.mubr.f32.gmra.mrb[0].mxu0 %v1088
    %v1174 = vpop.f32.mrb[0].mxu0
    %v1175 = vadd.f32 %v655, %v1174
    %v1176 = vpop.f32.mrb[0].mxu0
    %v1177 = vadd.f32 %v656, %v1176
    %1178 = vdwg.mxu0
    %s1179 = scalar_lea.vmem [#allocation5], 64
    %1180 = vst [vmem:[%s1179] sm:$0xff] %v1157
    %1181 = vst [vmem:[%s1179 + $0x8] sm:$0xff] %v1159
    %1182 = vst [vmem:[%s1179 + $0x10] sm:$0xff] %v1163
    %1183 = vst [vmem:[%s1179 + $0x18] sm:$0xff] %v1165
    %1184 = vst [vmem:[%s1179 + $0x20] sm:$0xff] %v1169
    %1185 = vst [vmem:[%s1179 + $0x28] sm:$0xff] %v1171
    %1186 = vst [vmem:[%s1179 + $0x30] sm:$0xff] %v1175
    %1187 = vst [vmem:[%s1179 + $0x38] sm:$0xff] %v1177
    // Predicated region
    $region22: #{tpu_custom_call.1} parent=1 // pred_check
      _
    $region23: #{tpu_custom_call.1} parent=1 // pred_check_branch
      %1189 = sbr.rel (0) target = $region25
    $region24: #{tpu_custom_call.1} parent=1 // pred_region
      %s1191 = ssub.s32 2048, 2048
      %1192 = vsyncadd [#allocation4], %s1191
      %s1193 = sshll.u32 [#allocation5], 4
      %s1194 = int_to_ptr.vmem [resolvable:$true] %s1193
      %1199 = dma.vmem_to_hbm [thread:$0]  %s1194, 2048, %s4, [#allocation4], 256, 256, 16
    $region25: #{tpu_custom_call.1} parent=1 // pred_fallthru
      _
    // Predicated region
    $region26: #{tpu_custom_call.1} parent=1 // pred_check
      _
    $region27: #{tpu_custom_call.1} parent=1 // pred_check_branch
      %1201 = sbr.rel (0) target = $region29
    $region28: #{tpu_custom_call.1} parent=1 // pred_region
      %1202 = dma.done [#allocation4], 2048
    $region29: #{tpu_custom_call.1} parent=1 // pred_fallthru
      _
    %1203 = vsyncpa [#allocation3], 1
    %1204 = vsyncpa [#allocation4], 1

</llo_original>
